<compile_context>
chip_gen: v5e
topology: v5e:2x2
jax: 0.10.0
libtpu: 0.0.40
codegen_flags: <defaults>
</compile_context>

<pallas_src>
import math

import jax
import jax.numpy as jnp
from jax.experimental import pallas as pl
from jax.experimental.pallas import tpu as pltpu

# CIFAR-style normalization constants from the module
MEAN = (0.4914, 0.4822, 0.4465)
STD = (0.2023, 0.1994, 0.201)


def _round_up(x, m):
    return (x + m - 1) // m * m


# ---------------------------------------------------------------------------
# Host-side glue: dense bicubic interpolation matrices for the sampled crop.
# (crop_len <= out_size here, so the resize is an up-scale; antialias is a
#  no-op for up-scaling, matching torchvision v2 behaviour.)
# ---------------------------------------------------------------------------
def _cubic(x, a=-0.75):
    x = jnp.abs(x)
    return jnp.where(
        x <= 1.0,
        ((a + 2.0) * x - (a + 3.0)) * x * x + 1.0,
        jnp.where(x < 2.0, (((x - 5.0) * x + 8.0) * x - 4.0) * a, 0.0),
    )


def bicubic_matrix(out_size, in_size, crop_start, crop_len):
    """(out_size, in_size) matrix W so that resized = W @ signal (one axis)."""
    scale = crop_len / out_size
    o = jnp.arange(out_size, dtype=jnp.float32)
    src = (o + 0.5) * scale - 0.5 + crop_start
    base = jnp.floor(src)
    frac = src - base
    rows = jnp.arange(out_size)
    W = jnp.zeros((out_size, in_size), jnp.float32)
    for k in range(-1, 3):  # 4-tap Keys cubic kernel (a = -0.75, torch bicubic)
        idx = jnp.clip(base.astype(jnp.int32) + k, 0, in_size - 1)
        W = W.at[rows, idx].add(_cubic(frac - k))
    return W


# ---------------------------------------------------------------------------
# Pallas kernel: one fat block of TILE_P planes per grid step.
# ---------------------------------------------------------------------------
def augment_kernel(x_ref, kt_ref, scale_ref, bias_ref, o_ref):
    # Raw image bytes arrive as int8; recover uint8 pixel values in f32 on-tile.
    xi = x_ref[...].astype(jnp.float32)                     # (P, HW)
    img = jnp.where(xi < 0.0, xi + 256.0, xi)               # uint8 -> [0, 255]
    # RandomResizedCrop + fused flip as one MXU matmul against kron(Wh, Ww)^T.
    y = jnp.dot(img, kt_ref[...], preferred_element_type=jnp.float32)
    # torchvision uint8 round-trip after resize, then ToDtype(scale=True) and
    # Normalize folded into per-plane scale/bias (scale=inv_std/255, bias=-mean*inv_std).
    y = jnp.clip(jnp.round(y), 0.0, 255.0)
    o_ref[...] = y * scale_ref[...] + bias_ref[...]


def _choose_tile(nc, tile_max):
    """Largest multiple-of-32 tile that splits NC into balanced, low-waste steps."""
    tile_max = max(32, _round_up(tile_max, 32))
    steps = -(-nc // tile_max)
    return _round_up(-(-nc // steps), 32)


def augment(x_u8, k_t, scale, bias, tile_p_max=512):
    N, C, H, W = x_u8.shape
    NC, HW = N * C, H * W
    # Lane-dense (N*C, H*W) plane layout; bitcast uint8->int8 is free (no f32 HBM copy).
    x_flat = jax.lax.bitcast_convert_type(x_u8.reshape(NC, HW), jnp.int8)

    tile_p = _choose_tile(NC, tile_p_max)
    nc_pad = _round_up(NC, tile_p)
    if nc_pad != NC:
        x_flat = jnp.pad(x_flat, ((0, nc_pad - NC), (0, 0)))
        scale = jnp.pad(scale, ((0, nc_pad - NC), (0, 0)))
        bias = jnp.pad(bias, ((0, nc_pad - NC), (0, 0)))

    out_flat = pl.pallas_call(
        augment_kernel,
        out_shape=jax.ShapeDtypeStruct((nc_pad, HW), jnp.float32),
        grid_spec=pltpu.PrefetchScalarGridSpec(
            num_scalar_prefetch=0,
            grid=(nc_pad // tile_p,),
            in_specs=[
                pl.BlockSpec((tile_p, HW), lambda i: (i, 0)),  # raw planes (int8)
                pl.BlockSpec((HW, HW), lambda i: (0, 0)),      # kron(Wh, Ww)^T (resident)
                pl.BlockSpec((tile_p, 1), lambda i: (i, 0)),   # per-plane scale
                pl.BlockSpec((tile_p, 1), lambda i: (i, 0)),   # per-plane bias
            ],
            out_specs=pl.BlockSpec((tile_p, HW), lambda i: (i, 0)),
        ),
        compiler_params=pltpu.CompilerParams(
            dimension_semantics=("parallel",)
        ),
    )(x_flat, k_t, scale, bias)
    return out_flat[:NC].reshape(N, C, H, W)


if __name__ == "__main__":
    key = jax.random.PRNGKey(0)
    N, C, H, W = 2, 3, 16, 16  # image_size = 16; 3 channels (Normalize has 3 stats)
    k1, k2, k3, k4, k5, k6 = jax.random.split(key, 6)

    # Synthetic uint8 image batch (NCHW), stays uint8 all the way to the kernel.
    x = jax.random.randint(k1, (N, C, H, W), 0, 256, dtype=jnp.int32).astype(jnp.uint8)

    # Deterministic draw of RandomResizedCrop(scale=(0.2, 1.0)) + flip parameters.
    # (torchvision v2 on a batched tensor samples ONE parameter set per call.)
    # TODO(synk): per-image crop params would need per-plane K matrices (e.g. via
    # scalar-prefetched indices into a stack of K's); batch-wide params match the
    # module's forward() on a batched tensor.
    scale_s = float(jax.random.uniform(k2, (), minval=0.2, maxval=1.0))
    log_ratio = float(
        jax.random.uniform(k3, (), minval=math.log(3.0 / 4.0), maxval=math.log(4.0 / 3.0))
    )
    ratio = math.exp(log_ratio)
    area = scale_s * H * W
    crop_h = max(1, min(H, int(round(math.sqrt(area / ratio)))))
    crop_w = max(1, min(W, int(round(math.sqrt(area * ratio)))))
    top = int(jax.random.randint(k4, (), 0, H - crop_h + 1))
    left = int(jax.random.randint(k5, (), 0, W - crop_w + 1))
    flip = bool(jax.random.bernoulli(k6, 0.5))

    wh = bicubic_matrix(H, H, top, crop_h)
    ww = bicubic_matrix(W, W, left, crop_w)
    if flip:  # RandomHorizontalFlip folded into the column interpolation matrix
        ww = ww[::-1, :]
    # vec(Wh @ img @ Ww^T) = kron(Wh, Ww) @ vec(img)  =>  out_flat = img_flat @ K^T
    # (Kron form is intended for small I-JEPA-demo images, HW = 256 here.)
    k_t = jnp.kron(wh, ww).T.astype(jnp.float32)

    mean = jnp.array(MEAN, jnp.float32)
    inv_std = 1.0 / jnp.array(STD, jnp.float32)
    scale_tab = jnp.tile(inv_std / 255.0, N).reshape(N * C, 1)   # plane p = n*C + c
    bias_tab = jnp.tile(-mean * inv_std, N).reshape(N * C, 1)

    # NOTE: the module's unused `kernel_size` (GaussianBlur) never appears in
    # forward(), so it is intentionally not implemented.
    out = augment(x, k_t, scale_tab, bias_tab)
    jax.block_until_ready(out)

    # Lenient pure-JAX reference check (same fused math); tolerance covers a few
    # uint8 rounding-unit flips from matmul precision differences.
    img_ref = x.reshape(N * C, H * W).astype(jnp.float32)
    y_ref = jnp.dot(img_ref, k_t, precision=jax.lax.Precision.HIGHEST)
    y_ref = jnp.clip(jnp.round(y_ref), 0.0, 255.0)
    ref = (y_ref * scale_tab + bias_tab).reshape(N, C, H, W)

    assert out.shape == (N, C, H, W) and out.dtype == jnp.float32
    assert float(jnp.max(jnp.abs(out - ref))) < 0.1
    print("KERNEL_OK")
</pallas_src>

<mosaic_0001>
module attributes {stable_mosaic.version = 11 : i64} {
  func.func @augment_kernel(%arg0: i32, %arg1: memref<32x256xi8, #tpu.memory_space<vmem>>, %arg2: memref<256x256xf32, #tpu.memory_space<vmem>>, %arg3: memref<32x1xf32, #tpu.memory_space<vmem>>, %arg4: memref<32x1xf32, #tpu.memory_space<vmem>>, %arg5: memref<32x256xf32, #tpu.memory_space<vmem>>) attributes {dimension_semantics = [#tpu.dimension_semantics<parallel>], iteration_bounds = array<i64: 1>, scalar_prefetch = 0 : i64, scratch_operands = 0 : i64, tpu.core_type = #tpu.core_type<tc>, window_params = [{transform_indices = @transform_0, window_bounds = array<i64: 32, 256>}, {pipeline_mode = #tpu.pipeline_mode<synchronous>, transform_indices = @transform_1, window_bounds = array<i64: 256, 256>}, {transform_indices = @transform_2, window_bounds = array<i64: 32, 1>}, {transform_indices = @transform_3, window_bounds = array<i64: 32, 1>}, {transform_indices = @transform_4, window_bounds = array<i64: 32, 256>}]} {
    %c0 = arith.constant 0 : index
    %c0_0 = arith.constant 0 : index
    %0 = vector.load %arg1[%c0, %c0_0] : memref<32x256xi8, #tpu.memory_space<vmem>>, vector<32x256xi8>
    %1 = arith.sitofp %0 : vector<32x256xi8> to vector<32x256xf32>
    %cst = arith.constant 0.000000e+00 : f32
    %2 = vector.broadcast %cst : f32 to vector<32x256xf32>
    %3 = arith.cmpf olt, %1, %2 : vector<32x256xf32>
    %cst_1 = arith.constant 2.560000e+02 : f32
    %4 = vector.broadcast %cst_1 : f32 to vector<32x256xf32>
    %5 = arith.addf %1, %4 : vector<32x256xf32>
    %6 = arith.select %3, %5, %1 : vector<32x256xi1>, vector<32x256xf32>
    %c0_2 = arith.constant 0 : index
    %c0_3 = arith.constant 0 : index
    %7 = vector.load %arg2[%c0_2, %c0_3] : memref<256x256xf32, #tpu.memory_space<vmem>>, vector<256x256xf32>
    %cst_4 = arith.constant dense<0.000000e+00> : vector<32x256xf32>
    %8 = tpu.matmul %6, %7, %cst_4 {dimension_numbers = #tpu.dot_dimension_numbers<[1], [0], [0], [1], [0, 0, 1, 1], [], []>} : vector<32x256xf32>, vector<256x256xf32>, vector<32x256xf32> -> vector<32x256xf32>
    %9 = math.roundeven %8 : vector<32x256xf32>
    %cst_5 = arith.constant 0.000000e+00 : f32
    %cst_6 = arith.constant 2.550000e+02 : f32
    %10 = vector.broadcast %cst_5 : f32 to vector<32x256xf32>
    %11 = arith.maximumf %10, %9 : vector<32x256xf32>
    %12 = vector.broadcast %cst_6 : f32 to vector<32x256xf32>
    %13 = arith.minimumf %12, %11 : vector<32x256xf32>
    %c0_7 = arith.constant 0 : index
    %c0_8 = arith.constant 0 : index
    %14 = vector.load %arg3[%c0_7, %c0_8] : memref<32x1xf32, #tpu.memory_space<vmem>>, vector<32x1xf32>
    %15 = vector.broadcast %14 : vector<32x1xf32> to vector<32x256xf32>
    %16 = arith.mulf %13, %15 : vector<32x256xf32>
    %c0_9 = arith.constant 0 : index
    %c0_10 = arith.constant 0 : index
    %17 = vector.load %arg4[%c0_9, %c0_10] : memref<32x1xf32, #tpu.memory_space<vmem>>, vector<32x1xf32>
    %18 = vector.broadcast %17 : vector<32x1xf32> to vector<32x256xf32>
    %19 = arith.addf %16, %18 : vector<32x256xf32>
    %c0_11 = arith.constant 0 : index
    %c0_12 = arith.constant 0 : index
    %20 = vector.load %arg5[%c0_11, %c0_12] : memref<32x256xf32, #tpu.memory_space<vmem>>, vector<32x256xf32>
    tpu.vector_store %arg5[%c0_11, %c0_12], %19 {strides = array<i32>} : memref<32x256xf32, #tpu.memory_space<vmem>>, vector<32x256xf32>,
    return
  }
  func.func @transform_0(%arg0: i32) -> (i32, i32) {
    %c0_i32 = arith.constant 0 : i32
    %c0_i32_0 = arith.constant 0 : i32
    return %arg0, %c0_i32 : i32, i32
  }
  func.func @transform_1(%arg0: i32) -> (i32, i32) {
    %c0_i32 = arith.constant 0 : i32
    %c0_i32_0 = arith.constant 0 : i32
    %c0_i32_1 = arith.constant 0 : i32
    return %c0_i32, %c0_i32_0 : i32, i32
  }
  func.func @transform_2(%arg0: i32) -> (i32, i32) {
    %c0_i32 = arith.constant 0 : i32
    %c0_i32_0 = arith.constant 0 : i32
    return %arg0, %c0_i32 : i32, i32
  }
  func.func @transform_3(%arg0: i32) -> (i32, i32) {
    %c0_i32 = arith.constant 0 : i32
    %c0_i32_0 = arith.constant 0 : i32
    return %arg0, %c0_i32 : i32, i32
  }
  func.func @transform_4(%arg0: i32) -> (i32, i32) {
    %c0_i32 = arith.constant 0 : i32
    %c0_i32_0 = arith.constant 0 : i32
    return %arg0, %c0_i32 : i32, i32
  }
}

</mosaic_0001>

<llo_original>
// kernel: tpu_custom_call.1
$region0: #{tpu_custom_call.1}
  #allocation0 [shape = 'u32[]', space=smem, size = 0x4, offset = 0x4, fixed_abs, tag = 'smem constant byte address 0x4 - core index']
  #allocation1 [shape = 'u32[72,128]{1,0:T(1,128)}', space=vmem, size = 0x9000, scoped, tag = 'internal scratch']
  %s0 = inlined_call_operand.vmem [shape: s8[32,256], index: 0, kind: input, shape index: {}]
  %s1 = inlined_call_operand.hbm [shape: f32[256,256], index: 1, kind: input, shape index: {}]
  %s2 = inlined_call_operand.vmem [shape: f32[32,1], index: 2, kind: input, shape index: {}]
  %s3 = inlined_call_operand.vmem [shape: f32[32,1], index: 3, kind: input, shape index: {}]
  %s4 = inlined_call_operand.hbm [shape: f32[32,256], index: 4, kind: output, shape index: {}]
  %s5 = sld [smem:[#allocation0]]
  $region30: #{tpu_custom_call.1} parent=0
    _
  %s7 = ssub.s32 1, %s5
  %s8 = scalar_select 0, %s7, %s5
  $region1: #{tpu_custom_call.1} parent=0
    #allocation2 [shape = 'u8[262144]{0}', space=vmem, size = 0x40000, scoped, tag = 'input window, operand 1, single buffered']
    #allocation3 [shape = 's32[1]{0}', space=sflag, size = 0x4, scoped, tag = 'scoped memory for tpu_custom_call.1']
    #allocation4 [shape = 's32[1]{0}', space=sflag, size = 0x4, scoped, tag = 'scoped memory for tpu_custom_call.1']
    #allocation5 [shape = 'u8[32768]{0}', space=vmem, size = 0x8000, scoped, tag = 'output window, operand 0, single buffered']
    %9 = vsyncpa [#allocation3], 0
    %10 = vsyncpa [#allocation4], 0
    // Predicated region
    $region2: #{tpu_custom_call.1} parent=1 // pred_check
      _
    $region3: #{tpu_custom_call.1} parent=1 // pred_check_branch
      %12 = sbr.rel (0) target = $region5
    $region4: #{tpu_custom_call.1} parent=1 // pred_region
      _
    $region5: #{tpu_custom_call.1} parent=1 // pred_fallthru
      _
    // Predicated region
    $region6: #{tpu_custom_call.1} parent=1 // pred_check
      _
    $region7: #{tpu_custom_call.1} parent=1 // pred_check_branch
      %14 = sbr.rel (0) target = $region9
    $region8: #{tpu_custom_call.1} parent=1 // pred_region
      %16 = vsyncadd [#allocation3], 0
      %s17 = sshll.u32 %s1, 4
      %s18 = int_to_ptr.hbm [resolvable:$true] %s17
      %s19 = sshll.u32 [#allocation2], 4
      %s20 = int_to_ptr.vmem [resolvable:$true] %s19
      %25 = dma.hbm_to_vmem [thread:$0]  %s18, 8192, %s20, [#allocation3], 256, 256, 16
    $region9: #{tpu_custom_call.1} parent=1 // pred_fallthru
      _
    // Predicated region
    $region10: #{tpu_custom_call.1} parent=1 // pred_check
      _
    $region11: #{tpu_custom_call.1} parent=1 // pred_check_branch
      %27 = sbr.rel (0) target = $region13
    $region12: #{tpu_custom_call.1} parent=1 // pred_region
      _
    $region13: #{tpu_custom_call.1} parent=1 // pred_fallthru
      _
    // Predicated region
    $region14: #{tpu_custom_call.1} parent=1 // pred_check
      _
    $region15: #{tpu_custom_call.1} parent=1 // pred_check_branch
      %29 = sbr.rel (0) target = $region17
    $region16: #{tpu_custom_call.1} parent=1 // pred_region
      _
    $region17: #{tpu_custom_call.1} parent=1 // pred_fallthru
      _
    // Predicated region
    $region18: #{tpu_custom_call.1} parent=1 // pred_check
      _
    $region19: #{tpu_custom_call.1} parent=1 // pred_check_branch
      %31 = sbr.rel (0) target = $region21
    $region20: #{tpu_custom_call.1} parent=1 // pred_region
      %33 = dma.done [#allocation3], 8192
    $region21: #{tpu_custom_call.1} parent=1 // pred_fallthru
      _
    %v34 = vld [vmem:[%s0] sm:$0xff]
    %v35 = vld [vmem:[%s0 + $0x8] sm:$0xff]
    %v36 = vunpack.c.0.s8 %v34
    %v37 = vunpack.c.0.s8 %v35
    %v38 = vunpack.c.1.s8 %v34
    %v39 = vunpack.c.1.s8 %v35
    %v40 = vunpack.c.2.s8 %v34
    %v41 = vunpack.c.2.s8 %v35
    %v42 = vunpack.c.3.s8 %v34
    %v43 = vunpack.c.3.s8 %v35
    %v44 = vcvt.s32.f32 %v36
    %v45 = vcvt.s32.f32 %v37
    %v46 = vcvt.s32.f32 %v38
    %v47 = vcvt.s32.f32 %v39
    %v48 = vcvt.s32.f32 %v40
    %v49 = vcvt.s32.f32 %v41
    %v50 = vcvt.s32.f32 %v42
    %v51 = vcvt.s32.f32 %v43
    %vm52 = vcmp.lt.f32.partialorder %v44, 0.0
    %vm53 = vcmp.lt.f32.partialorder %v45, 0.0
    %vm54 = vcmp.lt.f32.partialorder %v46, 0.0
    %vm55 = vcmp.lt.f32.partialorder %v47, 0.0
    %vm56 = vcmp.lt.f32.partialorder %v48, 0.0
    %vm57 = vcmp.lt.f32.partialorder %v49, 0.0
    %vm58 = vcmp.lt.f32.partialorder %v50, 0.0
    %vm59 = vcmp.lt.f32.partialorder %v51, 0.0
    %v60 = vadd.f32 %v44, 256.0
    %v61 = vadd.f32 %v45, 256.0
    %v62 = vadd.f32 %v46, 256.0
    %v63 = vadd.f32 %v47, 256.0
    %v64 = vadd.f32 %v48, 256.0
    %v65 = vadd.f32 %v49, 256.0
    %v66 = vadd.f32 %v50, 256.0
    %v67 = vadd.f32 %v51, 256.0
    %v68 = vsel %vm52, %v60, %v44
    %v69 = vsel %vm53, %v61, %v45
    %v70 = vsel %vm54, %v62, %v46
    %v71 = vsel %vm55, %v63, %v47
    %v72 = vsel %vm56, %v64, %v48
    %v73 = vsel %vm57, %v65, %v49
    %v74 = vsel %vm58, %v66, %v50
    %v75 = vsel %vm59, %v67, %v51
    %v76 = vld [vmem:[#allocation2] sm:$0xff]
    %v77 = vld [vmem:[#allocation2 + $0x8] sm:$0xff]
    %v78 = vld [vmem:[#allocation2 + $0x10] sm:$0xff]
    %v79 = vld [vmem:[#allocation2 + $0x18] sm:$0xff]
    %v80 = vld [vmem:[#allocation2 + $0x20] sm:$0xff]
    %v81 = vld [vmem:[#allocation2 + $0x28] sm:$0xff]
    %v82 = vld [vmem:[#allocation2 + $0x30] sm:$0xff]
    %v83 = vld [vmem:[#allocation2 + $0x38] sm:$0xff]
    %v84 = vld [vmem:[#allocation2 + $0x40] sm:$0xff]
    %v85 = vld [vmem:[#allocation2 + $0x48] sm:$0xff]
    %v86 = vld [vmem:[#allocation2 + $0x50] sm:$0xff]
    %v87 = vld [vmem:[#allocation2 + $0x58] sm:$0xff]
    %v88 = vld [vmem:[#allocation2 + $0x60] sm:$0xff]
    %v89 = vld [vmem:[#allocation2 + $0x68] sm:$0xff]
    %v90 = vld [vmem:[#allocation2 + $0x70] sm:$0xff]
    %v91 = vld [vmem:[#allocation2 + $0x78] sm:$0xff]
    %v92 = vld [vmem:[#allocation2 + $0x80] sm:$0xff]
    %v93 = vld [vmem:[#allocation2 + $0x88] sm:$0xff]
    %v94 = vld [vmem:[#allocation2 + $0x90] sm:$0xff]
    %v95 = vld [vmem:[#allocation2 + $0x98] sm:$0xff]
    %v96 = vld [vmem:[#allocation2 + $0xa0] sm:$0xff]
    %v97 = vld [vmem:[#allocation2 + $0xa8] sm:$0xff]
    %v98 = vld [vmem:[#allocation2 + $0xb0] sm:$0xff]
    %v99 = vld [vmem:[#allocation2 + $0xb8] sm:$0xff]
    %v100 = vld [vmem:[#allocation2 + $0xc0] sm:$0xff]
    %v101 = vld [vmem:[#allocation2 + $0xc8] sm:$0xff]
    %v102 = vld [vmem:[#allocation2 + $0xd0] sm:$0xff]
    %v103 = vld [vmem:[#allocation2 + $0xd8] sm:$0xff]
    %v104 = vld [vmem:[#allocation2 + $0xe0] sm:$0xff]
    %v105 = vld [vmem:[#allocation2 + $0xe8] sm:$0xff]
    %v106 = vld [vmem:[#allocation2 + $0xf0] sm:$0xff]
    %v107 = vld [vmem:[#allocation2 + $0xf8] sm:$0xff]
    %v108 = vld [vmem:[#allocation2 + $0x100] sm:$0xff]
    %v109 = vld [vmem:[#allocation2 + $0x108] sm:$0xff]
    %v110 = vld [vmem:[#allocation2 + $0x110] sm:$0xff]
    %v111 = vld [vmem:[#allocation2 + $0x118] sm:$0xff]
    %v112 = vld [vmem:[#allocation2 + $0x120] sm:$0xff]
    %v113 = vld [vmem:[#allocation2 + $0x128] sm:$0xff]
    %v114 = vld [vmem:[#allocation2 + $0x130] sm:$0xff]
    %v115 = vld [vmem:[#allocation2 + $0x138] sm:$0xff]
    %v116 = vld [vmem:[#allocation2 + $0x140] sm:$0xff]
    %v117 = vld [vmem:[#allocation2 + $0x148] sm:$0xff]
    %v118 = vld [vmem:[#allocation2 + $0x150] sm:$0xff]
    %v119 = vld [vmem:[#allocation2 + $0x158] sm:$0xff]
    %v120 = vld [vmem:[#allocation2 + $0x160] sm:$0xff]
    %v121 = vld [vmem:[#allocation2 + $0x168] sm:$0xff]
    %v122 = vld [vmem:[#allocation2 + $0x170] sm:$0xff]
    %v123 = vld [vmem:[#allocation2 + $0x178] sm:$0xff]
    %v124 = vld [vmem:[#allocation2 + $0x180] sm:$0xff]
    %v125 = vld [vmem:[#allocation2 + $0x188] sm:$0xff]
    %v126 = vld [vmem:[#allocation2 + $0x190] sm:$0xff]
    %v127 = vld [vmem:[#allocation2 + $0x198] sm:$0xff]
    %v128 = vld [vmem:[#allocation2 + $0x1a0] sm:$0xff]
    %v129 = vld [vmem:[#allocation2 + $0x1a8] sm:$0xff]
    %v130 = vld [vmem:[#allocation2 + $0x1b0] sm:$0xff]
    %v131 = vld [vmem:[#allocation2 + $0x1b8] sm:$0xff]
    %v132 = vld [vmem:[#allocation2 + $0x1c0] sm:$0xff]
    %v133 = vld [vmem:[#allocation2 + $0x1c8] sm:$0xff]
    %v134 = vld [vmem:[#allocation2 + $0x1d0] sm:$0xff]
    %v135 = vld [vmem:[#allocation2 + $0x1d8] sm:$0xff]
    %v136 = vld [vmem:[#allocation2 + $0x1e0] sm:$0xff]
    %v137 = vld [vmem:[#allocation2 + $0x1e8] sm:$0xff]
    %v138 = vld [vmem:[#allocation2 + $0x1f0] sm:$0xff]
    %v139 = vld [vmem:[#allocation2 + $0x1f8] sm:$0xff]
    %140 = vmatpush.msra.mxu0 %v106
    %141 = vmatpush.msra.mxu0 %v104
    %142 = vmatpush.msra.mxu0 %v102
    %143 = vmatpush.msra.mxu0 %v100
    %144 = vmatpush.msra.mxu0 %v98
    %145 = vmatpush.msra.mxu0 %v96
    %146 = vmatpush.msra.mxu0 %v94
    %147 = vmatpush.msra.mxu0 %v92
    %148 = vmatpush.msra.mxu0 %v90
    %149 = vmatpush.msra.mxu0 %v88
    %150 = vmatpush.msra.mxu0 %v86
    %151 = vmatpush.msra.mxu0 %v84
    %152 = vmatpush.msra.mxu0 %v82
    %153 = vmatpush.msra.mxu0 %v80
    %154 = vmatpush.msra.mxu0 %v78
    %155 = vmatpush.msra.mxu0 %v76
    %156 = vmatmul.f32.gmra.mxu0 %v68
    %v157 = vpop.f32.mrf.mxu0
    %v158 = vadd.f32 0.0, %v157
    %159 = vmatmul.f32.gmra.mxu0 %v70
    %v160 = vpop.f32.mrf.mxu0
    %v161 = vadd.f32 0.0, %v160
    %162 = vmatmul.f32.gmra.mxu0 %v72
    %v163 = vpop.f32.mrf.mxu0
    %v164 = vadd.f32 0.0, %v163
    %165 = vmatmul.f32.gmra.mxu0 %v74
    %v166 = vpop.f32.mrf.mxu0
    %v167 = vadd.f32 0.0, %v166
    %168 = vdwg.mxu0
    %169 = vmatpush.msra.mxu0 %v138
    %170 = vmatpush.msra.mxu0 %v136
    %171 = vmatpush.msra.mxu0 %v134
    %172 = vmatpush.msra.mxu0 %v132
    %173 = vmatpush.msra.mxu0 %v130
    %174 = vmatpush.msra.mxu0 %v128
    %175 = vmatpush.msra.mxu0 %v126
    %176 = vmatpush.msra.mxu0 %v124
    %177 = vmatpush.msra.mxu0 %v122
    %178 = vmatpush.msra.mxu0 %v120
    %179 = vmatpush.msra.mxu0 %v118
    %180 = vmatpush.msra.mxu0 %v116
    %181 = vmatpush.msra.mxu0 %v114
    %182 = vmatpush.msra.mxu0 %v112
    %183 = vmatpush.msra.mxu0 %v110
    %184 = vmatpush.msra.mxu0 %v108
    %185 = vmatmul.f32.gmra.mxu0 %v69
    %v186 = vpop.f32.mrf.mxu0
    %v187 = vadd.f32 %v158, %v186
    %188 = vmatmul.f32.gmra.mxu0 %v71
    %v189 = vpop.f32.mrf.mxu0
    %v190 = vadd.f32 %v161, %v189
    %191 = vmatmul.f32.gmra.mxu0 %v73
    %v192 = vpop.f32.mrf.mxu0
    %v193 = vadd.f32 %v164, %v192
    %194 = vmatmul.f32.gmra.mxu0 %v75
    %v195 = vpop.f32.mrf.mxu0
    %v196 = vadd.f32 %v167, %v195
    %197 = vdwg.mxu0
    %198 = vmatpush.msra.mxu0 %v107
    %199 = vmatpush.msra.mxu0 %v105
    %200 = vmatpush.msra.mxu0 %v103
    %201 = vmatpush.msra.mxu0 %v101
    %202 = vmatpush.msra.mxu0 %v99
    %203 = vmatpush.msra.mxu0 %v97
    %204 = vmatpush.msra.mxu0 %v95
    %205 = vmatpush.msra.mxu0 %v93
    %206 = vmatpush.msra.mxu0 %v91
    %207 = vmatpush.msra.mxu0 %v89
    %208 = vmatpush.msra.mxu0 %v87
    %209 = vmatpush.msra.mxu0 %v85
    %210 = vmatpush.msra.mxu0 %v83
    %211 = vmatpush.msra.mxu0 %v81
    %212 = vmatpush.msra.mxu0 %v79
    %213 = vmatpush.msra.mxu0 %v77
    %214 = vmatmul.f32.gmra.mxu0 %v68
    %v215 = vpop.f32.mrf.mxu0
    %v216 = vadd.f32 0.0, %v215
    %217 = vmatmul.f32.gmra.mxu0 %v70
    %v218 = vpop.f32.mrf.mxu0
    %v219 = vadd.f32 0.0, %v218
    %220 = vmatmul.f32.gmra.mxu0 %v72
    %v221 = vpop.f32.mrf.mxu0
    %v222 = vadd.f32 0.0, %v221
    %223 = vmatmul.f32.gmra.mxu0 %v74
    %v224 = vpop.f32.mrf.mxu0
    %v225 = vadd.f32 0.0, %v224
    %226 = vdwg.mxu0
    %227 = vmatpush.msra.mxu0 %v139
    %228 = vmatpush.msra.mxu0 %v137
    %229 = vmatpush.msra.mxu0 %v135
    %230 = vmatpush.msra.mxu0 %v133
    %231 = vmatpush.msra.mxu0 %v131
    %232 = vmatpush.msra.mxu0 %v129
    %233 = vmatpush.msra.mxu0 %v127
    %234 = vmatpush.msra.mxu0 %v125
    %235 = vmatpush.msra.mxu0 %v123
    %236 = vmatpush.msra.mxu0 %v121
    %237 = vmatpush.msra.mxu0 %v119
    %238 = vmatpush.msra.mxu0 %v117
    %239 = vmatpush.msra.mxu0 %v115
    %240 = vmatpush.msra.mxu0 %v113
    %241 = vmatpush.msra.mxu0 %v111
    %242 = vmatpush.msra.mxu0 %v109
    %243 = vmatmul.f32.gmra.mxu0 %v69
    %v244 = vpop.f32.mrf.mxu0
    %v245 = vadd.f32 %v216, %v244
    %246 = vmatmul.f32.gmra.mxu0 %v71
    %v247 = vpop.f32.mrf.mxu0
    %v248 = vadd.f32 %v219, %v247
    %249 = vmatmul.f32.gmra.mxu0 %v73
    %v250 = vpop.f32.mrf.mxu0
    %v251 = vadd.f32 %v222, %v250
    %252 = vmatmul.f32.gmra.mxu0 %v75
    %v253 = vpop.f32.mrf.mxu0
    %v254 = vadd.f32 %v225, %v253
    %255 = vdwg.mxu0
    %v256 = vround.ne.pseudo %v187
    %v257 = vround.ne.pseudo %v245
    %v258 = vround.ne.pseudo %v190
    %v259 = vround.ne.pseudo %v248
    %v260 = vround.ne.pseudo %v193
    %v261 = vround.ne.pseudo %v251
    %v262 = vround.ne.pseudo %v196
    %v263 = vround.ne.pseudo %v254
    %v264 = vmax.f32 %v256, 0.0
    %v265 = vmax.f32 %v257, 0.0
    %v266 = vmax.f32 %v258, 0.0
    %v267 = vmax.f32 %v259, 0.0
    %v268 = vmax.f32 %v260, 0.0
    %v269 = vmax.f32 %v261, 0.0
    %v270 = vmax.f32 %v262, 0.0
    %v271 = vmax.f32 %v263, 0.0
    %v272 = vmin.f32 %v264, 255.0
    %v273 = vmin.f32 %v265, 255.0
    %v274 = vmin.f32 %v266, 255.0
    %v275 = vmin.f32 %v267, 255.0
    %v276 = vmin.f32 %v268, 255.0
    %v277 = vmin.f32 %v269, 255.0
    %v278 = vmin.f32 %v270, 255.0
    %v279 = vmin.f32 %v271, 255.0
    %v280 = vld [vmem:[%s2] sm:$0xff]
    %v281 = vld [vmem:[%s2 + $0x8] sm:$0xff]
    %v282 = vld [vmem:[%s2 + $0x10] sm:$0xff]
    %v283 = vld [vmem:[%s2 + $0x18] sm:$0xff]
    %285 = vset.pattern.permute.xlu0 0
    %286 = vperm.xlu0 %285, %v280
    %v287 = vpop.permute.xlu0 %286
    %290 = vset.pattern.permute.xlu0 0
    %291 = vperm.xlu0 %290, %v281
    %v292 = vpop.permute.xlu0 %291
    %295 = vset.pattern.permute.xlu0 0
    %296 = vperm.xlu0 %295, %v282
    %v297 = vpop.permute.xlu0 %296
    %300 = vset.pattern.permute.xlu0 0
    %301 = vperm.xlu0 %300, %v283
    %v302 = vpop.permute.xlu0 %301
    %v304 = vmul.f32 %v272, %v287
    %v305 = vmul.f32 %v273, %v287
    %v306 = vmul.f32 %v274, %v292
    %v307 = vmul.f32 %v275, %v292
    %v308 = vmul.f32 %v276, %v297
    %v309 = vmul.f32 %v277, %v297
    %v310 = vmul.f32 %v278, %v302
    %v311 = vmul.f32 %v279, %v302
    %v312 = vld [vmem:[%s3] sm:$0xff]
    %v313 = vld [vmem:[%s3 + $0x8] sm:$0xff]
    %v314 = vld [vmem:[%s3 + $0x10] sm:$0xff]
    %v315 = vld [vmem:[%s3 + $0x18] sm:$0xff]
    %317 = vset.pattern.permute.xlu0 0
    %318 = vperm.xlu0 %317, %v312
    %v319 = vpop.permute.xlu0 %318
    %322 = vset.pattern.permute.xlu0 0
    %323 = vperm.xlu0 %322, %v313
    %v324 = vpop.permute.xlu0 %323
    %327 = vset.pattern.permute.xlu0 0
    %328 = vperm.xlu0 %327, %v314
    %v329 = vpop.permute.xlu0 %328
    %332 = vset.pattern.permute.xlu0 0
    %333 = vperm.xlu0 %332, %v315
    %v334 = vpop.permute.xlu0 %333
    %v336 = vadd.f32 %v304, %v319
    %v337 = vadd.f32 %v305, %v319
    %v338 = vadd.f32 %v306, %v324
    %v339 = vadd.f32 %v307, %v324
    %v340 = vadd.f32 %v308, %v329
    %v341 = vadd.f32 %v309, %v329
    %v342 = vadd.f32 %v310, %v334
    %v343 = vadd.f32 %v311, %v334
    %344 = vst [vmem:[#allocation5] sm:$0xff] %v336
    %345 = vst [vmem:[#allocation5 + $0x8] sm:$0xff] %v337
    %346 = vst [vmem:[#allocation5 + $0x10] sm:$0xff] %v338
    %347 = vst [vmem:[#allocation5 + $0x18] sm:$0xff] %v339
    %348 = vst [vmem:[#allocation5 + $0x20] sm:$0xff] %v340
    %349 = vst [vmem:[#allocation5 + $0x28] sm:$0xff] %v341
    %350 = vst [vmem:[#allocation5 + $0x30] sm:$0xff] %v342
    %351 = vst [vmem:[#allocation5 + $0x38] sm:$0xff] %v343
    // Predicated region
    $region22: #{tpu_custom_call.1} parent=1 // pred_check
      _
    $region23: #{tpu_custom_call.1} parent=1 // pred_check_branch
      %353 = sbr.rel (0) target = $region25
    $region24: #{tpu_custom_call.1} parent=1 // pred_region
      %355 = vsyncadd [#allocation4], 0
      %s356 = sshll.u32 [#allocation5], 4
      %s357 = int_to_ptr.vmem [resolvable:$true] %s356
      %s358 = sshll.u32 %s4, 4
      %s359 = int_to_ptr.hbm [resolvable:$true] %s358
      %364 = dma.vmem_to_hbm [thread:$0]  %s357, 1024, %s359, [#allocation4], 256, 256, 16
    $region25: #{tpu_custom_call.1} parent=1 // pred_fallthru
      _
    // Predicated region
    $region26: #{tpu_custom_call.1} parent=1 // pred_check
      _
    $region27: #{tpu_custom_call.1} parent=1 // pred_check_branch
      %366 = sbr.rel (0) target = $region29
    $region28: #{tpu_custom_call.1} parent=1 // pred_region
      %368 = dma.done [#allocation4], 1024
    $region29: #{tpu_custom_call.1} parent=1 // pred_fallthru
      _
    %369 = vsyncpa [#allocation3], 1
    %370 = vsyncpa [#allocation4], 1

</llo_original>
